<compile_context>
chip_gen: v5e
topology: v5e:2x2
jax: 0.10.0
libtpu: 0.0.40
codegen_flags: <defaults>
</compile_context>

<pallas_src>
import functools

import jax
import jax.numpy as jnp
from jax.experimental import pallas as pl
from jax.experimental.pallas import tpu as pltpu

_LANE = 128      # minimum lane multiple
_SUBLANE = 8     # sublane multiple


def _round_up(x, m):
    return ((x + m - 1) // m) * m


def _device_kind():
    try:
        return jax.devices()[0].device_kind.lower()
    except Exception:
        return ""


def _tpu_vmem_capacity():
    """Per-core VMEM bytes; conservative 64 MiB (v7x-sized) fallback."""
    try:
        return int(pltpu.get_tpu_info().vmem_capacity_bytes)
    except Exception:
        return 64 * 1024 * 1024


def _vmem_limit_bytes(vmem_cap, kind):
    limit = int(0.8 * vmem_cap)
    if "v7" in kind:                      # 64 MiB per TC -> leave headroom
        limit = min(limit, 52 * 1024 * 1024)
    return limit


def _resident_spec(shape):
    """Full-array block with a constant index_map: fetched once, kept
    VMEM-resident, single-buffered (double-buffering would only burn VMEM)."""
    idx = lambda i: (0,) * len(shape)
    try:
        return pl.BlockSpec(shape, idx, pipeline_mode=pl.Buffered(1))
    except TypeError:     # very old jax without pipeline_mode kwarg
        return pl.BlockSpec(shape, idx)


# ----------------------------------------------------------------------------
# One-time parameter preparation (hoisted out of the forward pass).
# ----------------------------------------------------------------------------
def prepare_projector(weights, biases):
    """Pad feature dims to an MXU-friendly multiple, cast weights to bf16,
    keep biases in f32, and decide fused-vs-layered execution."""
    num_layers = len(weights)
    assert num_layers == len(biases) >= 1
    dims = [weights[0].shape[0]] + [w.shape[1] for w in weights]

    kind = _device_kind()
    vmem_cap = _tpu_vmem_capacity()
    # v6e/v7x MXU is 256 wide -> prefer 256-aligned K/N there; v5e (128-wide
    # MXU) keeps 128.  Fall back to 128 if 256 padding would blow the budget.
    align_candidates = (128,) if ("v5" in kind or "v4" in kind) else (256, 128)

    fused_ok = False
    dims_p = None
    for align in align_candidates:
        dims_p = [_round_up(d, align) for d in dims]
        w_bytes = sum(dims_p[i] * dims_p[i + 1] * 2 for i in range(num_layers))
        b_bytes = num_layers * _SUBLANE * max(dims_p[1:]) * 4
        tm_max = 512                      # largest batch tile we ever use
        io_bytes = 2 * tm_max * dims_p[0] * 2 + 2 * tm_max * dims_p[-1] * 4
        act_bytes = 3 * tm_max * max(dims_p) * 4   # live f32/bf16 temporaries
        fused_ok = (w_bytes + b_bytes + io_bytes + act_bytes
                    <= int(0.70 * vmem_cap))
        if fused_ok:
            break

    w_pads, b_pads = [], []
    for li, (w, b) in enumerate(zip(weights, biases)):
        ip, op = dims_p[li], dims_p[li + 1]
        w_p = jnp.zeros((ip, op), jnp.bfloat16).at[
            : w.shape[0], : w.shape[1]].set(w.astype(jnp.bfloat16))
        b_p = jnp.zeros((1, op), jnp.float32).at[0, : b.shape[0]].set(
            b.astype(jnp.float32))
        w_pads.append(w_p)
        b_pads.append(b_p)

    return {
        "num_layers": num_layers,
        "dims": tuple(dims),
        "dims_p": tuple(dims_p),
        "weights": w_pads,
        "biases": b_pads,
        "fused_ok": fused_ok,
        "vmem_cap": vmem_cap,
        "kind": kind,
    }


# ----------------------------------------------------------------------------
# Fused path: whole MLP per batch tile, all weights VMEM-resident.
# ----------------------------------------------------------------------------
def _projector_fused_kernel(num_layers, x_ref, *refs):
    *param_refs, out_ref = refs   # [w0, b0, w1, b1, ...], out

    def linear(h_bf16, layer):
        w = param_refs[2 * layer][...]          # bf16 (in_p, out_p)
        b = param_refs[2 * layer + 1][...]      # f32  (1, out_p)
        return jnp.dot(h_bf16, w, preferred_element_type=jnp.float32) + b

    h = x_ref[...]                              # bf16 batch tile
    # layers 0 .. L-1, each followed by ReLU (the reference loop already runs
    # the last layer once with ReLU); bias-add/ReLU stay f32 (v5e-safe VPU),
    # inter-layer handoff is bf16 (MXU input dtype anyway).
    for layer in range(num_layers):
        h = jnp.maximum(linear(h, layer), 0.0).astype(jnp.bfloat16)
    # ... and then the reference applies the last layer AGAIN, without ReLU.
    out_ref[...] = linear(h, num_layers - 1).astype(out_ref.dtype)


def _forward_fused(x, prep, tm=None):
    B, in_dim = x.shape
    num_layers = prep["num_layers"]
    dims, dims_p = prep["dims"], prep["dims_p"]
    vmem_cap, kind = prep["vmem_cap"], prep["kind"]
    small_vmem = ("v7" in kind) or (vmem_cap <= 64 * 1024 * 1024)

    # --- batch tiling: large enough to feed the MXU and amortize the ~0.35us
    # per-step overhead, small enough to avoid dead-row padding and (on v7x)
    # to give the 'parallel' axis >= 2 steps for the two TensorCores.
    if tm is None:
        if B <= 512:
            B_pad = _round_up(B, _SUBLANE)
            tm = B_pad
            if small_vmem and B_pad % (2 * _SUBLANE) == 0:
                tm = B_pad // 2
        else:
            B_pad = _round_up(B, 256)
            tm = 512 if (not small_vmem and B_pad % 512 == 0) else 256
    else:
        tm = _round_up(tm, _SUBLANE)
        B_pad = _round_up(B, tm)

    # --- pad batch/features and pre-cast to bf16 (zero padding is exact:
    # padded weight rows/cols and biases are 0, so padded activation lanes
    # stay 0 through every layer and the double-applied last layer).
    x_p = jnp.zeros((B_pad, dims_p[0]), jnp.bfloat16)
    x_p = x_p.at[:B, :in_dim].set(x.astype(jnp.bfloat16))

    params = []
    in_specs = [pl.BlockSpec((tm, dims_p[0]), lambda i: (i, 0))]
    for li in range(num_layers):
        w_p, b_p = prep["weights"][li], prep["biases"][li]
        params += [w_p, b_p]
        in_specs.append(_resident_spec(w_p.shape))
        in_specs.append(_resident_spec(b_p.shape))

    kernel = functools.partial(_projector_fused_kernel, num_layers)
    out_p = pl.pallas_call(
        kernel,
        out_shape=jax.ShapeDtypeStruct((B_pad, dims_p[-1]), x.dtype),
        grid_spec=pltpu.PrefetchScalarGridSpec(
            num_scalar_prefetch=0,
            grid=(B_pad // tm,),
            in_specs=in_specs,
            out_specs=pl.BlockSpec((tm, dims_p[-1]), lambda i: (i, 0)),
        ),
        compiler_params=pltpu.CompilerParams(
            dimension_semantics=("parallel",),
            vmem_limit_bytes=_vmem_limit_bytes(vmem_cap, kind),
        ),
    )(x_p, *params)

    return out_p[:B, : dims[-1]]


# ----------------------------------------------------------------------------
# Fallback path: weights too big for VMEM residency -> per-layer tiled matmul.
# ----------------------------------------------------------------------------
def _linear_kernel(apply_relu, x_ref, w_ref, b_ref, o_ref, acc_ref):
    k = pl.program_id(2)

    @pl.when(k == 0)
    def _():
        acc_ref[...] = jnp.zeros_like(acc_ref)

    acc_ref[...] += jnp.dot(x_ref[...], w_ref[...],
                            preferred_element_type=jnp.float32)

    @pl.when(k == pl.num_programs(2) - 1)
    def _():
        r = acc_ref[...] + b_ref[...]
        if apply_relu:
            r = jnp.maximum(r, 0.0)
        o_ref[...] = r.astype(o_ref.dtype)


def _pick_tile(dim_p, cap):
    t = min(cap, dim_p)
    while dim_p % t:
        t //= 2
    return max(t, 1)


def _linear_layer(x_p, w_p, b_p, apply_relu, out_dtype, vmem_cap, kind):
    """One tiled Linear (+ optional ReLU): y = x @ W + b, grid (M, N, K)."""
    M, K = x_p.shape
    _, N = w_p.shape
    tm = _pick_tile(M, 512)
    tn = _pick_tile(N, 512)
    tk = _pick_tile(K, 512)
    kernel = functools.partial(_linear_kernel, apply_relu)
    return pl.pallas_call(
        kernel,
        out_shape=jax.ShapeDtypeStruct((M, N), out_dtype),
        grid_spec=pltpu.PrefetchScalarGridSpec(
            num_scalar_prefetch=0,
            grid=(M // tm, N // tn, K // tk),
            in_specs=[pl.BlockSpec((tm, tk), lambda i, j, k: (i, k)),
                      pl.BlockSpec((tk, tn), lambda i, j, k: (k, j)),
                      pl.BlockSpec((1, tn), lambda i, j, k: (0, j))],
            out_specs=pl.BlockSpec((tm, tn), lambda i, j, k: (i, j)),
            scratch_shapes=[pltpu.VMEM((tm, tn), jnp.float32)],
        ),
        compiler_params=pltpu.CompilerParams(
            dimension_semantics=("parallel", "parallel", "arbitrary"),
            vmem_limit_bytes=_vmem_limit_bytes(vmem_cap, kind),
        ),
    )(x_p, w_p, b_p)


def _forward_layered(x, prep):
    B, in_dim = x.shape
    num_layers = prep["num_layers"]
    dims, dims_p = prep["dims"], prep["dims_p"]
    vmem_cap, kind = prep["vmem_cap"], prep["kind"]

    B_pad = _round_up(B, 256) if B > 256 else _round_up(B, _SUBLANE)
    x_p = jnp.zeros((B_pad, dims_p[0]), jnp.bfloat16)
    x_p = x_p.at[:B, :in_dim].set(x.astype(jnp.bfloat16))

    h = x_p
    for li in range(num_layers):
        h = _linear_layer(h, prep["weights"][li], prep["biases"][li],
                          True, jnp.bfloat16, vmem_cap, kind)
    out_p = _linear_layer(h, prep["weights"][num_layers - 1],
                          prep["biases"][num_layers - 1],
                          False, x.dtype, vmem_cap, kind)
    return out_p[:B, : dims[-1]]


def projector_forward(x, prep, tm=None):
    """x: (B, input_dim); prep: output of prepare_projector()."""
    if prep["fused_ok"]:
        return _forward_fused(x, prep, tm=tm)
    return _forward_layered(x, prep)


# ----------------------------------------------------------------------------
# Test harness
# ----------------------------------------------------------------------------
def _init_params(key, input_dim, hidden_dim, output_dim, num_layers):
    """PyTorch-style Linear init: U(-1/sqrt(fan_in), 1/sqrt(fan_in)).
    Weights are returned already transposed to (in_features, out_features)."""
    dims = [input_dim] + [hidden_dim] * (num_layers - 1) + [output_dim]
    weights, biases = [], []
    for li in range(num_layers):
        fan_in, fan_out = dims[li], dims[li + 1]
        key, kw, kb = jax.random.split(key, 3)
        bound = 1.0 / jnp.sqrt(jnp.float32(fan_in))
        w = jax.random.uniform(kw, (fan_in, fan_out), jnp.float32, -bound, bound)
        b = jax.random.uniform(kb, (fan_out,), jnp.float32, -bound, bound)
        weights.append(w)
        biases.append(b)
    return weights, biases


def _reference_forward(x, weights, biases, num_layers):
    """Plain-JAX transcription of the PyTorch forward (incl. the double-apply
    quirk), using the same bf16-input / f32-accumulate matmul precision as the
    kernel so the comparison is apples-to-apples."""
    def lin(h_bf16, w, b):
        return jnp.dot(h_bf16, w.astype(jnp.bfloat16),
                       preferred_element_type=jnp.float32) + b.astype(jnp.float32)

    h = x.astype(jnp.bfloat16)
    h = jnp.maximum(lin(h, weights[0], biases[0]), 0.0).astype(jnp.bfloat16)
    for i in range(num_layers - 1):
        h = jnp.maximum(lin(h, weights[i + 1], biases[i + 1]),
                        0.0).astype(jnp.bfloat16)
    return lin(h, weights[num_layers - 1], biases[num_layers - 1])


if __name__ == "__main__":
    # Small shapes consistent with the module; hidden_dim == output_dim so the
    # double application of the last layer is well-formed (as in PyTorch).
    input_dim, hidden_dim, output_dim, num_layers = 16, 32, 32, 3
    batch = 16

    key = jax.random.PRNGKey(0)
    key, kx = jax.random.split(key)
    x = jax.random.normal(kx, (batch, input_dim), jnp.float32)

    weights, biases = _init_params(key, input_dim, hidden_dim, output_dim,
                                   num_layers)

    prep = prepare_projector(weights, biases)   # one-time param prep (hoisted)
    out = projector_forward(x, prep)
    out = jax.block_until_ready(out)

    ref = _reference_forward(x, weights, biases, num_layers)
    assert out.shape == (batch, output_dim)
    assert jnp.allclose(out, ref, atol=2e-2, rtol=2e-2), "mismatch vs reference"

    print("KERNEL_OK")
</pallas_src>

<mosaic_0001>
module attributes {stable_mosaic.version = 11 : i64} {
  func.func @_projector_fused_kernel(%arg0: i32, %arg1: memref<8x256xbf16, #tpu.memory_space<vmem>>, %arg2: memref<256x256xbf16, #tpu.memory_space<vmem>>, %arg3: memref<1x256xf32, #tpu.memory_space<vmem>>, %arg4: memref<256x256xbf16, #tpu.memory_space<vmem>>, %arg5: memref<1x256xf32, #tpu.memory_space<vmem>>, %arg6: memref<256x256xbf16, #tpu.memory_space<vmem>>, %arg7: memref<1x256xf32, #tpu.memory_space<vmem>>, %arg8: memref<8x256xf32, #tpu.memory_space<vmem>>) attributes {dimension_semantics = [#tpu.dimension_semantics<parallel>], iteration_bounds = array<i64: 2>, scalar_prefetch = 0 : i64, scratch_operands = 0 : i64, tpu.core_type = #tpu.core_type<tc>, window_params = [{transform_indices = @transform_0, window_bounds = array<i64: 8, 256>}, {pipeline_mode = #tpu.pipeline_mode<synchronous>, transform_indices = @transform_1, window_bounds = array<i64: 256, 256>}, {pipeline_mode = #tpu.pipeline_mode<synchronous>, transform_indices = @transform_2, window_bounds = array<i64: 1, 256>}, {pipeline_mode = #tpu.pipeline_mode<synchronous>, transform_indices = @transform_3, window_bounds = array<i64: 256, 256>}, {pipeline_mode = #tpu.pipeline_mode<synchronous>, transform_indices = @transform_4, window_bounds = array<i64: 1, 256>}, {pipeline_mode = #tpu.pipeline_mode<synchronous>, transform_indices = @transform_5, window_bounds = array<i64: 256, 256>}, {pipeline_mode = #tpu.pipeline_mode<synchronous>, transform_indices = @transform_6, window_bounds = array<i64: 1, 256>}, {transform_indices = @transform_7, window_bounds = array<i64: 8, 256>}]} {
    %c0 = arith.constant 0 : index
    %c0_0 = arith.constant 0 : index
    %0 = vector.load %arg1[%c0, %c0_0] : memref<8x256xbf16, #tpu.memory_space<vmem>>, vector<8x256xbf16>
    %c0_1 = arith.constant 0 : index
    %c0_2 = arith.constant 0 : index
    %1 = vector.load %arg2[%c0_1, %c0_2] : memref<256x256xbf16, #tpu.memory_space<vmem>>, vector<256x256xbf16>
    %c0_3 = arith.constant 0 : index
    %c0_4 = arith.constant 0 : index
    %2 = vector.load %arg3[%c0_3, %c0_4] : memref<1x256xf32, #tpu.memory_space<vmem>>, vector<1x256xf32>
    %cst = arith.constant dense<0.000000e+00> : vector<8x256xf32>
    %3 = tpu.matmul %0, %1, %cst {dimension_numbers = #tpu.dot_dimension_numbers<[1], [0], [0], [1], [0, 0, 1, 1], [], []>} : vector<8x256xbf16>, vector<256x256xbf16>, vector<8x256xf32> -> vector<8x256xf32>
    %4 = vector.broadcast %2 : vector<1x256xf32> to vector<8x256xf32>
    %5 = arith.addf %3, %4 : vector<8x256xf32>
    %cst_5 = arith.constant 0.000000e+00 : f32
    %6 = vector.broadcast %cst_5 : f32 to vector<8x256xf32>
    %7 = arith.maximumf %5, %6 : vector<8x256xf32>
    %8 = arith.truncf %7 : vector<8x256xf32> to vector<8x256xbf16>
    %c0_6 = arith.constant 0 : index
    %c0_7 = arith.constant 0 : index
    %9 = vector.load %arg4[%c0_6, %c0_7] : memref<256x256xbf16, #tpu.memory_space<vmem>>, vector<256x256xbf16>
    %c0_8 = arith.constant 0 : index
    %c0_9 = arith.constant 0 : index
    %10 = vector.load %arg5[%c0_8, %c0_9] : memref<1x256xf32, #tpu.memory_space<vmem>>, vector<1x256xf32>
    %cst_10 = arith.constant dense<0.000000e+00> : vector<8x256xf32>
    %11 = tpu.matmul %8, %9, %cst_10 {dimension_numbers = #tpu.dot_dimension_numbers<[1], [0], [0], [1], [0, 0, 1, 1], [], []>} : vector<8x256xbf16>, vector<256x256xbf16>, vector<8x256xf32> -> vector<8x256xf32>
    %12 = vector.broadcast %10 : vector<1x256xf32> to vector<8x256xf32>
    %13 = arith.addf %11, %12 : vector<8x256xf32>
    %cst_11 = arith.constant 0.000000e+00 : f32
    %14 = vector.broadcast %cst_11 : f32 to vector<8x256xf32>
    %15 = arith.maximumf %13, %14 : vector<8x256xf32>
    %16 = arith.truncf %15 : vector<8x256xf32> to vector<8x256xbf16>
    %c0_12 = arith.constant 0 : index
    %c0_13 = arith.constant 0 : index
    %17 = vector.load %arg6[%c0_12, %c0_13] : memref<256x256xbf16, #tpu.memory_space<vmem>>, vector<256x256xbf16>
    %c0_14 = arith.constant 0 : index
    %c0_15 = arith.constant 0 : index
    %18 = vector.load %arg7[%c0_14, %c0_15] : memref<1x256xf32, #tpu.memory_space<vmem>>, vector<1x256xf32>
    %cst_16 = arith.constant dense<0.000000e+00> : vector<8x256xf32>
    %19 = tpu.matmul %16, %17, %cst_16 {dimension_numbers = #tpu.dot_dimension_numbers<[1], [0], [0], [1], [0, 0, 1, 1], [], []>} : vector<8x256xbf16>, vector<256x256xbf16>, vector<8x256xf32> -> vector<8x256xf32>
    %20 = vector.broadcast %18 : vector<1x256xf32> to vector<8x256xf32>
    %21 = arith.addf %19, %20 : vector<8x256xf32>
    %cst_17 = arith.constant 0.000000e+00 : f32
    %22 = vector.broadcast %cst_17 : f32 to vector<8x256xf32>
    %23 = arith.maximumf %21, %22 : vector<8x256xf32>
    %24 = arith.truncf %23 : vector<8x256xf32> to vector<8x256xbf16>
    %c0_18 = arith.constant 0 : index
    %c0_19 = arith.constant 0 : index
    %25 = vector.load %arg6[%c0_18, %c0_19] : memref<256x256xbf16, #tpu.memory_space<vmem>>, vector<256x256xbf16>
    %c0_20 = arith.constant 0 : index
    %c0_21 = arith.constant 0 : index
    %26 = vector.load %arg7[%c0_20, %c0_21] : memref<1x256xf32, #tpu.memory_space<vmem>>, vector<1x256xf32>
    %cst_22 = arith.constant dense<0.000000e+00> : vector<8x256xf32>
    %27 = tpu.matmul %24, %25, %cst_22 {dimension_numbers = #tpu.dot_dimension_numbers<[1], [0], [0], [1], [0, 0, 1, 1], [], []>} : vector<8x256xbf16>, vector<256x256xbf16>, vector<8x256xf32> -> vector<8x256xf32>
    %28 = vector.broadcast %26 : vector<1x256xf32> to vector<8x256xf32>
    %29 = arith.addf %27, %28 : vector<8x256xf32>
    %c0_23 = arith.constant 0 : index
    %c0_24 = arith.constant 0 : index
    %30 = vector.load %arg8[%c0_23, %c0_24] : memref<8x256xf32, #tpu.memory_space<vmem>>, vector<8x256xf32>
    tpu.vector_store %arg8[%c0_23, %c0_24], %29 {strides = array<i32>} : memref<8x256xf32, #tpu.memory_space<vmem>>, vector<8x256xf32>,
    return
  }
  func.func @transform_0(%arg0: i32) -> (i32, i32) {
    %c0_i32 = arith.constant 0 : i32
    %c0_i32_0 = arith.constant 0 : i32
    return %arg0, %c0_i32 : i32, i32
  }
  func.func @transform_1(%arg0: i32) -> (i32, i32) {
    %c0_i32 = arith.constant 0 : i32
    %c0_i32_0 = arith.constant 0 : i32
    %c0_i32_1 = arith.constant 0 : i32
    return %c0_i32, %c0_i32_0 : i32, i32
  }
  func.func @transform_2(%arg0: i32) -> (i32, i32) {
    %c0_i32 = arith.constant 0 : i32
    %c0_i32_0 = arith.constant 0 : i32
    %c0_i32_1 = arith.constant 0 : i32
    return %c0_i32, %c0_i32_0 : i32, i32
  }
  func.func @transform_3(%arg0: i32) -> (i32, i32) {
    %c0_i32 = arith.constant 0 : i32
    %c0_i32_0 = arith.constant 0 : i32
    %c0_i32_1 = arith.constant 0 : i32
    return %c0_i32, %c0_i32_0 : i32, i32
  }
  func.func @transform_4(%arg0: i32) -> (i32, i32) {
    %c0_i32 = arith.constant 0 : i32
    %c0_i32_0 = arith.constant 0 : i32
    %c0_i32_1 = arith.constant 0 : i32
    return %c0_i32, %c0_i32_0 : i32, i32
  }
  func.func @transform_5(%arg0: i32) -> (i32, i32) {
    %c0_i32 = arith.constant 0 : i32
    %c0_i32_0 = arith.constant 0 : i32
    %c0_i32_1 = arith.constant 0 : i32
    return %c0_i32, %c0_i32_0 : i32, i32
  }
  func.func @transform_6(%arg0: i32) -> (i32, i32) {
    %c0_i32 = arith.constant 0 : i32
    %c0_i32_0 = arith.constant 0 : i32
    %c0_i32_1 = arith.constant 0 : i32
    return %c0_i32, %c0_i32_0 : i32, i32
  }
  func.func @transform_7(%arg0: i32) -> (i32, i32) {
    %c0_i32 = arith.constant 0 : i32
    %c0_i32_0 = arith.constant 0 : i32
    return %arg0, %c0_i32 : i32, i32
  }
}

</mosaic_0001>

<llo_original>
// kernel: tpu_custom_call.1
$region0: #{tpu_custom_call.1}
  #allocation0 [shape = 'u32[]', space=smem, size = 0x4, offset = 0x4, fixed_abs, tag = 'smem constant byte address 0x4 - core index']
  #allocation1 [shape = 'u32[72,128]{1,0:T(1,128)}', space=vmem, size = 0x9000, scoped, tag = 'internal scratch']
  %s0 = inlined_call_operand.hbm [shape: bf16[16,256], index: 0, kind: input, shape index: {}]
  %s1 = inlined_call_operand.hbm [shape: bf16[256,256], index: 1, kind: input, shape index: {}]
  %s2 = inlined_call_operand.hbm [shape: f32[1,256], index: 2, kind: input, shape index: {}]
  %s3 = inlined_call_operand.hbm [shape: bf16[256,256], index: 3, kind: input, shape index: {}]
  %s4 = inlined_call_operand.vmem [shape: f32[1,256], index: 4, kind: input, shape index: {}]
  %s5 = inlined_call_operand.hbm [shape: bf16[256,256], index: 5, kind: input, shape index: {}]
  %s6 = inlined_call_operand.vmem [shape: f32[1,256], index: 6, kind: input, shape index: {}]
  %s7 = inlined_call_operand.hbm [shape: f32[16,256], index: 7, kind: output, shape index: {}]
  %s8 = sld [smem:[#allocation0]]
  $region81: #{tpu_custom_call.1} parent=0
    _
  %s10 = ssub.s32 1, %s8
  %s11 = scalar_select 0, %s10, %s8
  $region1: #{tpu_custom_call.1} parent=0
    #allocation2 [shape = 'u8[8192]{0}', space=vmem, size = 0x2000, scoped, tag = 'input window, operand 0']
    #allocation3 [shape = 's32[2]{0}', space=sflag, size = 0x8, scoped, tag = 'scoped memory for tpu_custom_call.1']
    #allocation4 [shape = 's32[2]{0}', space=sflag, size = 0x8, scoped, tag = 'scoped memory for tpu_custom_call.1']
    #allocation5 [shape = 'u8[131072]{0}', space=vmem, size = 0x20000, scoped, tag = 'input window, operand 1, single buffered']
    #allocation6 [shape = 's32[1]{0}', space=sflag, size = 0x4, scoped, tag = 'scoped memory for tpu_custom_call.1']
    #allocation7 [shape = 'u8[1024]{0}', space=vmem, size = 0x400, scoped, tag = 'input window, operand 2, single buffered']
    #allocation8 [shape = 'u8[131072]{0}', space=vmem, size = 0x20000, scoped, tag = 'input window, operand 3, single buffered']
    #allocation9 [shape = 's32[1]{0}', space=sflag, size = 0x4, scoped, tag = 'scoped memory for tpu_custom_call.1']
    #allocation10 [shape = 'u8[131072]{0}', space=vmem, size = 0x20000, scoped, tag = 'input window, operand 5, single buffered']
    #allocation11 [shape = 'u8[16384]{0}', space=vmem, size = 0x4000, scoped, tag = 'output window, operand 0']
    %12 = vsyncpa [#allocation3], 0
    %s13 = scalar_lea.sflag [#allocation3], 1
    %14 = vsyncpa %s13, 0
    %15 = vsyncpa [#allocation6], 0
    %16 = vsyncpa [#allocation9], 0
    %17 = vsyncpa [#allocation4], 0
    %s18 = scalar_lea.sflag [#allocation4], 1
    %19 = vsyncpa %s18, 0
    loop: start=0, step=1, limit=4
    $region2: #{tpu_custom_call.1} parent=1 // loop_pre_header
      _
    $region3: #{tpu_custom_call.1} parent=1 // loop_header
      %s21 = sphi 0, %s25
      %p22 = scmp.ge.s32.totalorder %s21, 4
      %s31 = sphi 0, %s33
      %s34 = sphi 0, %s31
      %s35 = sphi 0, %s34
      %s51 = sphi 0, %s35
      %s55 = sphi 0, %s55
      %s57 = sphi 0, %s55
      %s58 = sphi 0, %s57
      %s72 = sphi 0, %s58
      %s76 = sphi 0, %s76
      %s78 = sphi 0, %s76
      %s79 = sphi 0, %s78
      %s93 = sphi 0, %s79
      %s97 = sphi 0, %s97
      %s99 = sphi 0, %s97
      %s100 = sphi 0, %s99
      %s114 = sphi 0, %s100
      %s118 = sphi 0, %s118
      %s120 = sphi 0, %s118
      %s121 = sphi 0, %s120
      %s135 = sphi 0, %s121
      %s139 = sphi 0, %s139
      %s141 = sphi 0, %s139
      %s142 = sphi 0, %s141
      %s156 = sphi 0, %s142
      %s160 = sphi 0, %s160
      %s162 = sphi 0, %s160
      %s163 = sphi 0, %s162
      %s177 = sphi 0, %s163
      %s183 = sphi 0, %s185
      %s186 = sphi 0, %s183
      %s187 = sphi 0, %s186
      %s203 = sphi 0, %s187
    $region4: #{tpu_custom_call.1} parent=1 // loop_header_branch
      %24 = sbr.rel (%p22) target = $region8
    $region5: #{tpu_custom_call.1} parent=1 // loop_body
      %s26 = ssub.s32 %s21, 1
      %s27 = ssub.s32 %s21, 2
      %s28 = sadd.s32 %s21, 1
      %s29 = ssub.s32 %s21, %s28
      %p30 = scmp.eq.s32.totalorder %s29, 0
      %s32 = sadd.s32 %s31, 1
      %s33 = scalar_select %p30, %s31, %s32
      %p36 = pneg %p30
      %p37 = scmp.eq.s32.totalorder %s21, 1
      %p38 = por %p36, %p37
      %p39 = scmp.ne.s32.totalorder %s31, %s34
      %p40 = scmp.eq.s32.totalorder %s21, 0
      %p41 = por %p39, %p40
      %p42 = scmp.ne.s32.totalorder %s31, %s34
      %p43 = scmp.eq.s32.totalorder %s26, 1
      %p44 = por %p42, %p43
      %p45 = scmp.ne.s32.totalorder %s34, %s35
      %p46 = scmp.eq.s32.totalorder %s26, 0
      %p47 = por %p45, %p46
      %p48 = scmp.ne.s32.totalorder %s34, %s35
      %p49 = scmp.eq.s32.totalorder %s27, 1
      %p50 = por %p48, %p49
      %p52 = scmp.ne.s32.totalorder %s35, %s51
      %p53 = scmp.eq.s32.totalorder %s27, 0
      %p54 = por %p52, %p53
      %s56 = sadd.s32 %s55, 1
      %p59 = scmp.eq.s32.totalorder %s21, 1
      %p60 = scmp.ne.s32.totalorder %s55, %s57
      %p61 = scmp.eq.s32.totalorder %s21, 0
      %p62 = por %p60, %p61
      %p63 = scmp.ne.s32.totalorder %s55, %s57
      %p64 = scmp.eq.s32.totalorder %s26, 1
      %p65 = por %p63, %p64
      %p66 = scmp.ne.s32.totalorder %s57, %s58
      %p67 = scmp.eq.s32.totalorder %s26, 0
      %p68 = por %p66, %p67
      %p69 = scmp.ne.s32.totalorder %s57, %s58
      %p70 = scmp.eq.s32.totalorder %s27, 1
      %p71 = por %p69, %p70
      %p73 = scmp.ne.s32.totalorder %s58, %s72
      %p74 = scmp.eq.s32.totalorder %s27, 0
      %p75 = por %p73, %p74
      %s77 = sadd.s32 %s76, 1
      %p80 = scmp.eq.s32.totalorder %s21, 1
      %p81 = scmp.ne.s32.totalorder %s76, %s78
      %p82 = scmp.eq.s32.totalorder %s21, 0
      %p83 = por %p81, %p82
      %p84 = scmp.ne.s32.totalorder %s76, %s78
      %p85 = scmp.eq.s32.totalorder %s26, 1
      %p86 = por %p84, %p85
      %p87 = scmp.ne.s32.totalorder %s78, %s79
      %p88 = scmp.eq.s32.totalorder %s26, 0
      %p89 = por %p87, %p88
      %p90 = scmp.ne.s32.totalorder %s78, %s79
      %p91 = scmp.eq.s32.totalorder %s27, 1
      %p92 = por %p90, %p91
      %p94 = scmp.ne.s32.totalorder %s79, %s93
      %p95 = scmp.eq.s32.totalorder %s27, 0
      %p96 = por %p94, %p95
      %s98 = sadd.s32 %s97, 1
      %p101 = scmp.eq.s32.totalorder %s21, 1
      %p102 = scmp.ne.s32.totalorder %s97, %s99
      %p103 = scmp.eq.s32.totalorder %s21, 0
      %p104 = por %p102, %p103
      %p105 = scmp.ne.s32.totalorder %s97, %s99
      %p106 = scmp.eq.s32.totalorder %s26, 1
      %p107 = por %p105, %p106
      %p108 = scmp.ne.s32.totalorder %s99, %s100
      %p109 = scmp.eq.s32.totalorder %s26, 0
      %p110 = por %p108, %p109
      %p111 = scmp.ne.s32.totalorder %s99, %s100
      %p112 = scmp.eq.s32.totalorder %s27, 1
      %p113 = por %p111, %p112
      %p115 = scmp.ne.s32.totalorder %s100, %s114
      %p116 = scmp.eq.s32.totalorder %s27, 0
      %p117 = por %p115, %p116
      %s119 = sadd.s32 %s118, 1
      %p122 = scmp.eq.s32.totalorder %s21, 1
      %p123 = scmp.ne.s32.totalorder %s118, %s120
      %p124 = scmp.eq.s32.totalorder %s21, 0
      %p125 = por %p123, %p124
      %p126 = scmp.ne.s32.totalorder %s118, %s120
      %p127 = scmp.eq.s32.totalorder %s26, 1
      %p128 = por %p126, %p127
      %p129 = scmp.ne.s32.totalorder %s120, %s121
      %p130 = scmp.eq.s32.totalorder %s26, 0
      %p131 = por %p129, %p130
      %p132 = scmp.ne.s32.totalorder %s120, %s121
      %p133 = scmp.eq.s32.totalorder %s27, 1
      %p134 = por %p132, %p133
      %p136 = scmp.ne.s32.totalorder %s121, %s135
      %p137 = scmp.eq.s32.totalorder %s27, 0
      %p138 = por %p136, %p137
      %s140 = sadd.s32 %s139, 1
      %p143 = scmp.eq.s32.totalorder %s21, 1
      %p144 = scmp.ne.s32.totalorder %s139, %s141
      %p145 = scmp.eq.s32.totalorder %s21, 0
      %p146 = por %p144, %p145
      %p147 = scmp.ne.s32.totalorder %s139, %s141
      %p148 = scmp.eq.s32.totalorder %s26, 1
      %p149 = por %p147, %p148
      %p150 = scmp.ne.s32.totalorder %s141, %s142
      %p151 = scmp.eq.s32.totalorder %s26, 0
      %p152 = por %p150, %p151
      %p153 = scmp.ne.s32.totalorder %s141, %s142
      %p154 = scmp.eq.s32.totalorder %s27, 1
      %p155 = por %p153, %p154
      %p157 = scmp.ne.s32.totalorder %s142, %s156
      %p158 = scmp.eq.s32.totalorder %s27, 0
      %p159 = por %p157, %p158
      %s161 = sadd.s32 %s160, 1
      %p164 = scmp.eq.s32.totalorder %s21, 1
      %p165 = scmp.ne.s32.totalorder %s160, %s162
      %p166 = scmp.eq.s32.totalorder %s21, 0
      %p167 = por %p165, %p166
      %p168 = scmp.ne.s32.totalorder %s160, %s162
      %p169 = scmp.eq.s32.totalorder %s26, 1
      %p170 = por %p168, %p169
      %p171 = scmp.ne.s32.totalorder %s162, %s163
      %p172 = scmp.eq.s32.totalorder %s26, 0
      %p173 = por %p171, %p172
      %p174 = scmp.ne.s32.totalorder %s162, %s163
      %p175 = scmp.eq.s32.totalorder %s27, 1
      %p176 = por %p174, %p175
      %p178 = scmp.ne.s32.totalorder %s163, %s177
      %p179 = scmp.eq.s32.totalorder %s27, 0
      %p180 = por %p178, %p179
      %s181 = ssub.s32 %s21, %s28
      %p182 = scmp.eq.s32.totalorder %s181, 0
      %s184 = sadd.s32 %s183, 1
      %s185 = scalar_select %p182, %s183, %s184
      %p188 = pneg %p182
      %p189 = scmp.eq.s32.totalorder %s21, 1
      %p190 = por %p188, %p189
      %p191 = scmp.ne.s32.totalorder %s183, %s186
      %p192 = scmp.eq.s32.totalorder %s21, 0
      %p193 = por %p191, %p192
      %p194 = scmp.ne.s32.totalorder %s183, %s186
      %p195 = scmp.eq.s32.totalorder %s26, 1
      %p196 = por %p194, %p195
      %p197 = scmp.ne.s32.totalorder %s186, %s187
      %p198 = scmp.eq.s32.totalorder %s26, 0
      %p199 = por %p197, %p198
      %p200 = scmp.ne.s32.totalorder %s186, %s187
      %p201 = scmp.eq.s32.totalorder %s27, 1
      %p202 = por %p200, %p201
      %p204 = scmp.ne.s32.totalorder %s187, %s203
      %p205 = scmp.eq.s32.totalorder %s27, 0
      %p206 = por %p204, %p205
      %p207 = scmp.le.s32.totalorder 1, %s21
      %p208 = scmp.lt.s32.totalorder %s21, 3
      %p209 = pnand %p207, %p208
      %p210 = pneg %p209
      // Predicated region
      $region9: #{tpu_custom_call.1} parent=5 // pred_check
        _
      $region10: #{tpu_custom_call.1} parent=5 // pred_check_branch
        %212 = sbr.rel (%p209) target = $region12
      $region11: #{tpu_custom_call.1} parent=5 // pred_region
        %s213 = ssub.s32 %s21, 1
        // Predicated region
        $region13: #{tpu_custom_call.1} parent=11 // pred_check
          %p214 = pneg %p68
        $region14: #{tpu_custom_call.1} parent=11 // pred_check_branch
          %216 = sbr.rel (%p214) target = $region16
        $region15: #{tpu_custom_call.1} parent=11 // pred_region
          %218 = vsyncadd [#allocation6], 0
          %s219 = sshll.u32 %s1, 4
          %s220 = int_to_ptr.hbm [resolvable:$true] %s219
          %s221 = sshll.u32 [#allocation5], 4
          %s222 = int_to_ptr.vmem [resolvable:$true] %s221
          %227 = dma.hbm_to_vmem [thread:$0]  %s220, 4096, %s222, [#allocation6], 128, 128, 8
        $region16: #{tpu_custom_call.1} parent=11 // pred_fallthru
          _
        // Predicated region
        $region17: #{tpu_custom_call.1} parent=11 // pred_check
          %p228 = pneg %p89
        $region18: #{tpu_custom_call.1} parent=11 // pred_check_branch
          %230 = sbr.rel (%p228) target = $region20
        $region19: #{tpu_custom_call.1} parent=11 // pred_region
          %232 = vsyncadd [#allocation6], 0
          %s234 = sshll.u32 %s2, 4
          %s235 = int_to_ptr.hbm [resolvable:$true] %s234
          %s236 = sshll.u32 [#allocation7], 4
          %s237 = int_to_ptr.vmem [resolvable:$true] %s236
          %239 = dma.hbm_to_vmem [thread:$0]  %s235, 32, %s237, [#allocation6]
        $region20: #{tpu_custom_call.1} parent=11 // pred_fallthru
          _
        // Predicated region
        $region21: #{tpu_custom_call.1} parent=11 // pred_check
          %p240 = pneg %p110
        $region22: #{tpu_custom_call.1} parent=11 // pred_check_branch
          %242 = sbr.rel (%p240) target = $region24
        $region23: #{tpu_custom_call.1} parent=11 // pred_region
          %244 = vsyncadd [#allocation9], 0
          %s245 = sshll.u32 %s3, 4
          %s246 = int_to_ptr.hbm [resolvable:$true] %s245
          %s247 = sshll.u32 [#allocation8], 4
          %s248 = int_to_ptr.vmem [resolvable:$true] %s247
          %253 = dma.hbm_to_vmem [thread:$0]  %s246, 4096, %s248, [#allocation9], 128, 128, 8
        $region24: #{tpu_custom_call.1} parent=11 // pred_fallthru
          _
        // Predicated region
        $region25: #{tpu_custom_call.1} parent=11 // pred_check
          %p254 = pneg %p131
        $region26: #{tpu_custom_call.1} parent=11 // pred_check_branch
          %256 = sbr.rel (%p254) target = $region28
        $region27: #{tpu_custom_call.1} parent=11 // pred_region
          _
        $region28: #{tpu_custom_call.1} parent=11 // pred_fallthru
          _
        // Predicated region
        $region29: #{tpu_custom_call.1} parent=11 // pred_check
          %p257 = pneg %p152
        $region30: #{tpu_custom_call.1} parent=11 // pred_check_branch
          %259 = sbr.rel (%p257) target = $region32
        $region31: #{tpu_custom_call.1} parent=11 // pred_region
          %261 = vsyncadd [#allocation9], 0
          %s262 = sshll.u32 %s5, 4
          %s263 = int_to_ptr.hbm [resolvable:$true] %s262
          %s264 = sshll.u32 [#allocation10], 4
          %s265 = int_to_ptr.vmem [resolvable:$true] %s264
          %270 = dma.hbm_to_vmem [thread:$0]  %s263, 4096, %s265, [#allocation9], 128, 128, 8
        $region32: #{tpu_custom_call.1} parent=11 // pred_fallthru
          _
        // Predicated region
        $region33: #{tpu_custom_call.1} parent=11 // pred_check
          %p271 = pneg %p173
        $region34: #{tpu_custom_call.1} parent=11 // pred_check_branch
          %273 = sbr.rel (%p271) target = $region36
        $region35: #{tpu_custom_call.1} parent=11 // pred_region
          _
        $region36: #{tpu_custom_call.1} parent=11 // pred_fallthru
          _
      $region12: #{tpu_custom_call.1} parent=5 // pred_fallthru
        _
      %p274 = scmp.lt.s32.totalorder %s21, 2
      // Predicated region
      $region37: #{tpu_custom_call.1} parent=5 // pred_check
        %p275 = pneg %p274
      $region38: #{tpu_custom_call.1} parent=5 // pred_check_branch
        %277 = sbr.rel (%p275) target = $region40
      $region39: #{tpu_custom_call.1} parent=5 // pred_region
        // Predicated region
        $region41: #{tpu_custom_call.1} parent=39 // pred_check
          %p278 = pneg %p41
        $region42: #{tpu_custom_call.1} parent=39 // pred_check_branch
          %280 = sbr.rel (%p278) target = $region44
        $region43: #{tpu_custom_call.1} parent=39 // pred_region
          %s281 = sand.u32 %s31, 1
          %s282 = scalar_lea.sflag [#allocation3], %s281
          %s283 = sand.u32 %s31, 1
          %s284 = smul.addr %s283, 8
          %s285 = scalar_lea.vmem [#allocation2], %s284
          %287 = vsyncadd %s282, 0
          %s288 = smul.addr %s21, 2
          %s289 = smul.addr %s288, 4
          %s290 = scalar_lea.hbm %s0, %s289
          %s292 = sshll.u32 %s290, 4
          %s293 = int_to_ptr.hbm [resolvable:$true] %s292
          %s294 = sshll.u32 %s285, 4
          %s295 = int_to_ptr.vmem [resolvable:$true] %s294
          %297 = dma.hbm_to_vmem [thread:$0]  %s293, 128, %s295, %s282
        $region44: #{tpu_custom_call.1} parent=39 // pred_fallthru
          _
      $region40: #{tpu_custom_call.1} parent=5 // pred_fallthru
        _
      %p298 = scmp.le.s32.totalorder 1, %s21
      %p299 = scmp.lt.s32.totalorder %s21, 3
      %p300 = pnand %p298, %p299
      %p301 = pneg %p300
      // Predicated region
      $region45: #{tpu_custom_call.1} parent=5 // pred_check
        _
      $region46: #{tpu_custom_call.1} parent=5 // pred_check_branch
        %303 = sbr.rel (%p300) target = $region48
      $region47: #{tpu_custom_call.1} parent=5 // pred_region
        %s304 = ssub.s32 %s21, 1
        %s305 = sand.u32 %s34, 1
        %s306 = scalar_lea.sflag [#allocation3], %s305
        %s307 = sand.u32 %s34, 1
        %s308 = smul.addr %s307, 8
        %s309 = scalar_lea.vmem [#allocation2], %s308
        // Predicated region
        $region49: #{tpu_custom_call.1} parent=47 // pred_check
          %p310 = pneg %p47
        $region50: #{tpu_custom_call.1} parent=47 // pred_check_branch
          %312 = sbr.rel (%p310) target = $region52
        $region51: #{tpu_custom_call.1} parent=47 // pred_region
          %314 = dma.done %s306, 128
        $region52: #{tpu_custom_call.1} parent=47 // pred_fallthru
          _
        // Predicated region
        $region53: #{tpu_custom_call.1} parent=47 // pred_check
          %p315 = pneg %p68
        $region54: #{tpu_custom_call.1} parent=47 // pred_check_branch
          %317 = sbr.rel (%p315) target = $region56
        $region55: #{tpu_custom_call.1} parent=47 // pred_region
          %319 = dma.done [#allocation6], 4096
        $region56: #{tpu_custom_call.1} parent=47 // pred_fallthru
          _
        // Predicated region
        $region57: #{tpu_custom_call.1} parent=47 // pred_check
          %p320 = pneg %p89
        $region58: #{tpu_custom_call.1} parent=47 // pred_check_branch
          %322 = sbr.rel (%p320) target = $region60
        $region59: #{tpu_custom_call.1} parent=47 // pred_region
          %324 = dma.done [#allocation6], 32
        $region60: #{tpu_custom_call.1} parent=47 // pred_fallthru
          _
        // Predicated region
        $region61: #{tpu_custom_call.1} parent=47 // pred_check
          %p325 = pneg %p110
        $region62: #{tpu_custom_call.1} parent=47 // pred_check_branch
          %327 = sbr.rel (%p325) target = $region64
        $region63: #{tpu_custom_call.1} parent=47 // pred_region
          %329 = dma.done [#allocation9], 4096
        $region64: #{tpu_custom_call.1} parent=47 // pred_fallthru
          _
        // Predicated region
        $region65: #{tpu_custom_call.1} parent=47 // pred_check
          %p330 = pneg %p152
        $region66: #{tpu_custom_call.1} parent=47 // pred_check_branch
          %332 = sbr.rel (%p330) target = $region68
        $region67: #{tpu_custom_call.1} parent=47 // pred_region
          %334 = dma.done [#allocation9], 4096
        $region68: #{tpu_custom_call.1} parent=47 // pred_fallthru
          _
        %s335 = sand.u32 %s34, 1
        %s336 = scalar_lea.sflag [#allocation3], %s335
        %s337 = sand.u32 %s34, 1
        %s338 = smul.addr %s337, 8
        %s339 = scalar_lea.vmem [#allocation2], %s338
        %p340 = pneg %p47
        %p341 = pneg %p44
        %p342 = pneg %p68
        %p343 = pneg %p65
        %p344 = pneg %p89
        %p345 = pneg %p86
        %p346 = pneg %p110
        %p347 = pneg %p107
        %p348 = pneg %p131
        %p349 = pneg %p128
        %p350 = pneg %p152
        %p351 = pneg %p149
        %p352 = pneg %p173
        %p353 = pneg %p170
        %p354 = pneg %p199
        %p355 = pneg %p196
        %s356 = sand.u32 %s186, 1
        %s357 = scalar_lea.sflag [#allocation4], %s356
        %s358 = sand.u32 %s186, 1
        %s359 = smul.addr %s358, 16
        %s360 = scalar_lea.vmem [#allocation11], %s359
        %v361 = vld [vmem:[%s309] sm:$0xff]
        %v362 = vld [vmem:[#allocation5] sm:$0xff]
        %v363 = vld [vmem:[#allocation5 + $0x8] sm:$0xff]
        %v364 = vld [vmem:[#allocation5 + $0x10] sm:$0xff]
        %v365 = vld [vmem:[#allocation5 + $0x18] sm:$0xff]
        %v366 = vld [vmem:[#allocation5 + $0x20] sm:$0xff]
        %v367 = vld [vmem:[#allocation5 + $0x28] sm:$0xff]
        %v368 = vld [vmem:[#allocation5 + $0x30] sm:$0xff]
        %v369 = vld [vmem:[#allocation5 + $0x38] sm:$0xff]
        %v370 = vld [vmem:[#allocation5 + $0x40] sm:$0xff]
        %v371 = vld [vmem:[#allocation5 + $0x48] sm:$0xff]
        %v372 = vld [vmem:[#allocation5 + $0x50] sm:$0xff]
        %v373 = vld [vmem:[#allocation5 + $0x58] sm:$0xff]
        %v374 = vld [vmem:[#allocation5 + $0x60] sm:$0xff]
        %v375 = vld [vmem:[#allocation5 + $0x68] sm:$0xff]
        %v376 = vld [vmem:[#allocation5 + $0x70] sm:$0xff]
        %v377 = vld [vmem:[#allocation5 + $0x78] sm:$0xff]
        %v378 = vld [vmem:[#allocation5 + $0x80] sm:$0xff]
        %v379 = vld [vmem:[#allocation5 + $0x88] sm:$0xff]
        %v380 = vld [vmem:[#allocation5 + $0x90] sm:$0xff]
        %v381 = vld [vmem:[#allocation5 + $0x98] sm:$0xff]
        %v382 = vld [vmem:[#allocation5 + $0xa0] sm:$0xff]
        %v383 = vld [vmem:[#allocation5 + $0xa8] sm:$0xff]
        %v384 = vld [vmem:[#allocation5 + $0xb0] sm:$0xff]
        %v385 = vld [vmem:[#allocation5 + $0xb8] sm:$0xff]
        %v386 = vld [vmem:[#allocation5 + $0xc0] sm:$0xff]
        %v387 = vld [vmem:[#allocation5 + $0xc8] sm:$0xff]
        %v388 = vld [vmem:[#allocation5 + $0xd0] sm:$0xff]
        %v389 = vld [vmem:[#allocation5 + $0xd8] sm:$0xff]
        %v390 = vld [vmem:[#allocation5 + $0xe0] sm:$0xff]
        %v391 = vld [vmem:[#allocation5 + $0xe8] sm:$0xff]
        %v392 = vld [vmem:[#allocation5 + $0xf0] sm:$0xff]
        %v393 = vld [vmem:[#allocation5 + $0xf8] sm:$0xff]
        %v394 = vld [vmem:[#allocation7] sm:$0x3]
        %v396 = vperm.slane %v394, 0
        %v397 = vperm.slane %v394, 1
        %v401 = vunpack.c.l.b16 %v361
        %v402 = vunpack.c.h.b16 %v361
        %v403 = vpack.c.b16 %v401, %v401
        %v404 = vpack.c.b16 %v402, %v402
        %v439 = vunpack.c.l.b16 %v362
        %v440 = vunpack.c.h.b16 %v362
        %v441 = vunpack.c.l.b16 %v363
        %v442 = vunpack.c.h.b16 %v363
        %v443 = vunpack.c.l.b16 %v364
        %v444 = vunpack.c.h.b16 %v364
        %v445 = vunpack.c.l.b16 %v365
        %v446 = vunpack.c.h.b16 %v365
        %v447 = vunpack.c.l.b16 %v366
        %v448 = vunpack.c.h.b16 %v366
        %v449 = vunpack.c.l.b16 %v367
        %v450 = vunpack.c.h.b16 %v367
        %v451 = vunpack.c.l.b16 %v368
        %v452 = vunpack.c.h.b16 %v368
        %v453 = vunpack.c.l.b16 %v369
        %v454 = vunpack.c.h.b16 %v369
        %v455 = vunpack.c.l.b16 %v370
        %v456 = vunpack.c.h.b16 %v370
        %v457 = vunpack.c.l.b16 %v371
        %v458 = vunpack.c.h.b16 %v371
        %v459 = vunpack.c.l.b16 %v372
        %v460 = vunpack.c.h.b16 %v372
        %v461 = vunpack.c.l.b16 %v373
        %v462 = vunpack.c.h.b16 %v373
        %v463 = vunpack.c.l.b16 %v374
        %v464 = vunpack.c.h.b16 %v374
        %v465 = vunpack.c.l.b16 %v375
        %v466 = vunpack.c.h.b16 %v375
        %v467 = vunpack.c.l.b16 %v376
        %v468 = vunpack.c.h.b16 %v376
        %v469 = vunpack.c.l.b16 %v377
        %v470 = vunpack.c.h.b16 %v377
        %v471 = vunpack.c.l.b16 %v378
        %v472 = vunpack.c.h.b16 %v378
        %v473 = vunpack.c.l.b16 %v379
        %v474 = vunpack.c.h.b16 %v379
        %v475 = vunpack.c.l.b16 %v380
        %v476 = vunpack.c.h.b16 %v380
        %v477 = vunpack.c.l.b16 %v381
        %v478 = vunpack.c.h.b16 %v381
        %v479 = vunpack.c.l.b16 %v382
        %v480 = vunpack.c.h.b16 %v382
        %v481 = vunpack.c.l.b16 %v383
        %v482 = vunpack.c.h.b16 %v383
        %v483 = vunpack.c.l.b16 %v384
        %v484 = vunpack.c.h.b16 %v384
        %v485 = vunpack.c.l.b16 %v385
        %v486 = vunpack.c.h.b16 %v385
        %v487 = vunpack.c.l.b16 %v386
        %v488 = vunpack.c.h.b16 %v386
        %v489 = vunpack.c.l.b16 %v387
        %v490 = vunpack.c.h.b16 %v387
        %v491 = vunpack.c.l.b16 %v388
        %v492 = vunpack.c.h.b16 %v388
        %v493 = vunpack.c.l.b16 %v389
        %v494 = vunpack.c.h.b16 %v389
        %v495 = vunpack.c.l.b16 %v390
        %v496 = vunpack.c.h.b16 %v390
        %v497 = vunpack.c.l.b16 %v391
        %v498 = vunpack.c.h.b16 %v391
        %v499 = vunpack.c.l.b16 %v392
        %v500 = vunpack.c.h.b16 %v392
        %v501 = vunpack.c.l.b16 %v393
        %v502 = vunpack.c.h.b16 %v393
        %v503 = vpack.c.b16 %v441, %v439
        %v504 = vpack.c.b16 %v442, %v440
        %v505 = vpack.c.b16 %v445, %v443
        %v506 = vpack.c.b16 %v446, %v444
        %v507 = vpack.c.b16 %v449, %v447
        %v508 = vpack.c.b16 %v450, %v448
        %v509 = vpack.c.b16 %v453, %v451
        %v510 = vpack.c.b16 %v454, %v452
        %v511 = vpack.c.b16 %v457, %v455
        %v512 = vpack.c.b16 %v458, %v456
        %v513 = vpack.c.b16 %v461, %v459
        %v514 = vpack.c.b16 %v462, %v460
        %v515 = vpack.c.b16 %v465, %v463
        %v516 = vpack.c.b16 %v466, %v464
        %v517 = vpack.c.b16 %v469, %v467
        %v518 = vpack.c.b16 %v470, %v468
        %v519 = vpack.c.b16 %v473, %v471
        %v520 = vpack.c.b16 %v474, %v472
        %v521 = vpack.c.b16 %v477, %v475
        %v522 = vpack.c.b16 %v478, %v476
        %v523 = vpack.c.b16 %v481, %v479
        %v524 = vpack.c.b16 %v482, %v480
        %v525 = vpack.c.b16 %v485, %v483
        %v526 = vpack.c.b16 %v486, %v484
        %v527 = vpack.c.b16 %v489, %v487
        %v528 = vpack.c.b16 %v490, %v488
        %v529 = vpack.c.b16 %v493, %v491
        %v530 = vpack.c.b16 %v494, %v492
        %v531 = vpack.c.b16 %v497, %v495
        %v532 = vpack.c.b16 %v498, %v496
        %v533 = vpack.c.b16 %v501, %v499
        %v534 = vpack.c.b16 %v502, %v500
        %567 = vmatpush.bf16.msra.mxu0 %v517
        %568 = vmatpush.bf16.msra.mxu0 %v515
        %569 = vmatpush.bf16.msra.mxu0 %v513
        %570 = vmatpush.bf16.msra.mxu0 %v511
        %571 = vmatpush.bf16.msra.mxu0 %v509
        %572 = vmatpush.bf16.msra.mxu0 %v507
        %573 = vmatpush.bf16.msra.mxu0 %v505
        %574 = vmatpush.bf16.msra.mxu0 %v503
        %575 = vmatmul.bf16.gmra.mxu0 %v403
        %v576 = vpop.f32.mrf.mxu0
        %v577 = vadd.f32 %v396, %v576
        %v578 = vpop.f32.mrf.mxu0
        %579 = vdwg.mxu0
        %580 = vmatpush.bf16.msra.mxu0 %v533
        %581 = vmatpush.bf16.msra.mxu0 %v531
        %582 = vmatpush.bf16.msra.mxu0 %v529
        %583 = vmatpush.bf16.msra.mxu0 %v527
        %584 = vmatpush.bf16.msra.mxu0 %v525
        %585 = vmatpush.bf16.msra.mxu0 %v523
        %586 = vmatpush.bf16.msra.mxu0 %v521
        %587 = vmatpush.bf16.msra.mxu0 %v519
        %588 = vmatmul.bf16.gmra.mxu0 %v404
        %v589 = vpop.f32.mrf.mxu0
        %v590 = vadd.f32 %v577, %v589
        %v591 = vpop.f32.mrf.mxu0
        %592 = vdwg.mxu0
        %593 = vmatpush.bf16.msra.mxu0 %v518
        %594 = vmatpush.bf16.msra.mxu0 %v516
        %595 = vmatpush.bf16.msra.mxu0 %v514
        %596 = vmatpush.bf16.msra.mxu0 %v512
        %597 = vmatpush.bf16.msra.mxu0 %v510
        %598 = vmatpush.bf16.msra.mxu0 %v508
        %599 = vmatpush.bf16.msra.mxu0 %v506
        %600 = vmatpush.bf16.msra.mxu0 %v504
        %601 = vmatmul.bf16.gmra.mxu0 %v403
        %v602 = vpop.f32.mrf.mxu0
        %v603 = vadd.f32 %v397, %v602
        %v604 = vpop.f32.mrf.mxu0
        %605 = vdwg.mxu0
        %606 = vmatpush.bf16.msra.mxu0 %v534
        %607 = vmatpush.bf16.msra.mxu0 %v532
        %608 = vmatpush.bf16.msra.mxu0 %v530
        %609 = vmatpush.bf16.msra.mxu0 %v528
        %610 = vmatpush.bf16.msra.mxu0 %v526
        %611 = vmatpush.bf16.msra.mxu0 %v524
        %612 = vmatpush.bf16.msra.mxu0 %v522
        %613 = vmatpush.bf16.msra.mxu0 %v520
        %614 = vmatmul.bf16.gmra.mxu0 %v404
        %v615 = vpop.f32.mrf.mxu0
        %v616 = vadd.f32 %v603, %v615
        %v617 = vpop.f32.mrf.mxu0
        %618 = vdwg.mxu0
        %v619 = vmax.f32 %v590, 0.0
        %v620 = vmax.f32 %v616, 0.0
        %v621 = vpack.c.bf16 %v619, %v619
        %v622 = vpack.c.bf16 %v620, %v620
        %v623 = vld [vmem:[#allocation8] sm:$0xff]
        %v624 = vld [vmem:[#allocation8 + $0x8] sm:$0xff]
        %v625 = vld [vmem:[#allocation8 + $0x10] sm:$0xff]
        %v626 = vld [vmem:[#allocation8 + $0x18] sm:$0xff]
        %v627 = vld [vmem:[#allocation8 + $0x20] sm:$0xff]
        %v628 = vld [vmem:[#allocation8 + $0x28] sm:$0xff]
        %v629 = vld [vmem:[#allocation8 + $0x30] sm:$0xff]
        %v630 = vld [vmem:[#allocation8 + $0x38] sm:$0xff]
        %v631 = vld [vmem:[#allocation8 + $0x40] sm:$0xff]
        %v632 = vld [vmem:[#allocation8 + $0x48] sm:$0xff]
        %v633 = vld [vmem:[#allocation8 + $0x50] sm:$0xff]
        %v634 = vld [vmem:[#allocation8 + $0x58] sm:$0xff]
        %v635 = vld [vmem:[#allocation8 + $0x60] sm:$0xff]
        %v636 = vld [vmem:[#allocation8 + $0x68] sm:$0xff]
        %v637 = vld [vmem:[#allocation8 + $0x70] sm:$0xff]
        %v638 = vld [vmem:[#allocation8 + $0x78] sm:$0xff]
        %v639 = vld [vmem:[#allocation8 + $0x80] sm:$0xff]
        %v640 = vld [vmem:[#allocation8 + $0x88] sm:$0xff]
        %v641 = vld [vmem:[#allocation8 + $0x90] sm:$0xff]
        %v642 = vld [vmem:[#allocation8 + $0x98] sm:$0xff]
        %v643 = vld [vmem:[#allocation8 + $0xa0] sm:$0xff]
        %v644 = vld [vmem:[#allocation8 + $0xa8] sm:$0xff]
        %v645 = vld [vmem:[#allocation8 + $0xb0] sm:$0xff]
        %v646 = vld [vmem:[#allocation8 + $0xb8] sm:$0xff]
        %v647 = vld [vmem:[#allocation8 + $0xc0] sm:$0xff]
        %v648 = vld [vmem:[#allocation8 + $0xc8] sm:$0xff]
        %v649 = vld [vmem:[#allocation8 + $0xd0] sm:$0xff]
        %v650 = vld [vmem:[#allocation8 + $0xd8] sm:$0xff]
        %v651 = vld [vmem:[#allocation8 + $0xe0] sm:$0xff]
        %v652 = vld [vmem:[#allocation8 + $0xe8] sm:$0xff]
        %v653 = vld [vmem:[#allocation8 + $0xf0] sm:$0xff]
        %v654 = vld [vmem:[#allocation8 + $0xf8] sm:$0xff]
        %v655 = vld [vmem:[%s4] sm:$0x3]
        %v657 = vperm.slane %v655, 0
        %v658 = vperm.slane %v655, 1
        %v693 = vunpack.c.l.b16 %v623
        %v694 = vunpack.c.h.b16 %v623
        %v695 = vunpack.c.l.b16 %v624
        %v696 = vunpack.c.h.b16 %v624
        %v697 = vunpack.c.l.b16 %v625
        %v698 = vunpack.c.h.b16 %v625
        %v699 = vunpack.c.l.b16 %v626
        %v700 = vunpack.c.h.b16 %v626
        %v701 = vunpack.c.l.b16 %v627
        %v702 = vunpack.c.h.b16 %v627
        %v703 = vunpack.c.l.b16 %v628
        %v704 = vunpack.c.h.b16 %v628
        %v705 = vunpack.c.l.b16 %v629
        %v706 = vunpack.c.h.b16 %v629
        %v707 = vunpack.c.l.b16 %v630
        %v708 = vunpack.c.h.b16 %v630
        %v709 = vunpack.c.l.b16 %v631
        %v710 = vunpack.c.h.b16 %v631
        %v711 = vunpack.c.l.b16 %v632
        %v712 = vunpack.c.h.b16 %v632
        %v713 = vunpack.c.l.b16 %v633
        %v714 = vunpack.c.h.b16 %v633
        %v715 = vunpack.c.l.b16 %v634
        %v716 = vunpack.c.h.b16 %v634
        %v717 = vunpack.c.l.b16 %v635
        %v718 = vunpack.c.h.b16 %v635
        %v719 = vunpack.c.l.b16 %v636
        %v720 = vunpack.c.h.b16 %v636
        %v721 = vunpack.c.l.b16 %v637
        %v722 = vunpack.c.h.b16 %v637
        %v723 = vunpack.c.l.b16 %v638
        %v724 = vunpack.c.h.b16 %v638
        %v725 = vunpack.c.l.b16 %v639
        %v726 = vunpack.c.h.b16 %v639
        %v727 = vunpack.c.l.b16 %v640
        %v728 = vunpack.c.h.b16 %v640
        %v729 = vunpack.c.l.b16 %v641
        %v730 = vunpack.c.h.b16 %v641
        %v731 = vunpack.c.l.b16 %v642
        %v732 = vunpack.c.h.b16 %v642
        %v733 = vunpack.c.l.b16 %v643
        %v734 = vunpack.c.h.b16 %v643
        %v735 = vunpack.c.l.b16 %v644
        %v736 = vunpack.c.h.b16 %v644
        %v737 = vunpack.c.l.b16 %v645
        %v738 = vunpack.c.h.b16 %v645
        %v739 = vunpack.c.l.b16 %v646
        %v740 = vunpack.c.h.b16 %v646
        %v741 = vunpack.c.l.b16 %v647
        %v742 = vunpack.c.h.b16 %v647
        %v743 = vunpack.c.l.b16 %v648
        %v744 = vunpack.c.h.b16 %v648
        %v745 = vunpack.c.l.b16 %v649
        %v746 = vunpack.c.h.b16 %v649
        %v747 = vunpack.c.l.b16 %v650
        %v748 = vunpack.c.h.b16 %v650
        %v749 = vunpack.c.l.b16 %v651
        %v750 = vunpack.c.h.b16 %v651
        %v751 = vunpack.c.l.b16 %v652
        %v752 = vunpack.c.h.b16 %v652
        %v753 = vunpack.c.l.b16 %v653
        %v754 = vunpack.c.h.b16 %v653
        %v755 = vunpack.c.l.b16 %v654
        %v756 = vunpack.c.h.b16 %v654
        %v757 = vpack.c.b16 %v695, %v693
        %v758 = vpack.c.b16 %v696, %v694
        %v759 = vpack.c.b16 %v699, %v697
        %v760 = vpack.c.b16 %v700, %v698
        %v761 = vpack.c.b16 %v703, %v701
        %v762 = vpack.c.b16 %v704, %v702
        %v763 = vpack.c.b16 %v707, %v705
        %v764 = vpack.c.b16 %v708, %v706
        %v765 = vpack.c.b16 %v711, %v709
        %v766 = vpack.c.b16 %v712, %v710
        %v767 = vpack.c.b16 %v715, %v713
        %v768 = vpack.c.b16 %v716, %v714
        %v769 = vpack.c.b16 %v719, %v717
        %v770 = vpack.c.b16 %v720, %v718
        %v771 = vpack.c.b16 %v723, %v721
        %v772 = vpack.c.b16 %v724, %v722
        %v773 = vpack.c.b16 %v727, %v725
        %v774 = vpack.c.b16 %v728, %v726
        %v775 = vpack.c.b16 %v731, %v729
        %v776 = vpack.c.b16 %v732, %v730
        %v777 = vpack.c.b16 %v735, %v733
        %v778 = vpack.c.b16 %v736, %v734
        %v779 = vpack.c.b16 %v739, %v737
        %v780 = vpack.c.b16 %v740, %v738
        %v781 = vpack.c.b16 %v743, %v741
        %v782 = vpack.c.b16 %v744, %v742
        %v783 = vpack.c.b16 %v747, %v745
        %v784 = vpack.c.b16 %v748, %v746
        %v785 = vpack.c.b16 %v751, %v749
        %v786 = vpack.c.b16 %v752, %v750
        %v787 = vpack.c.b16 %v755, %v753
        %v788 = vpack.c.b16 %v756, %v754
        %821 = vmatpush.bf16.msra.mxu0 %v771
        %822 = vmatpush.bf16.msra.mxu0 %v769
        %823 = vmatpush.bf16.msra.mxu0 %v767
        %824 = vmatpush.bf16.msra.mxu0 %v765
        %825 = vmatpush.bf16.msra.mxu0 %v763
        %826 = vmatpush.bf16.msra.mxu0 %v761
        %827 = vmatpush.bf16.msra.mxu0 %v759
        %828 = vmatpush.bf16.msra.mxu0 %v757
        %829 = vmatmul.bf16.gmra.mxu0 %v621
        %v830 = vpop.f32.mrf.mxu0
        %v831 = vadd.f32 %v657, %v830
        %v832 = vpop.f32.mrf.mxu0
        %833 = vdwg.mxu0
        %834 = vmatpush.bf16.msra.mxu0 %v787
        %835 = vmatpush.bf16.msra.mxu0 %v785
        %836 = vmatpush.bf16.msra.mxu0 %v783
        %837 = vmatpush.bf16.msra.mxu0 %v781
        %838 = vmatpush.bf16.msra.mxu0 %v779
        %839 = vmatpush.bf16.msra.mxu0 %v777
        %840 = vmatpush.bf16.msra.mxu0 %v775
        %841 = vmatpush.bf16.msra.mxu0 %v773
        %842 = vmatmul.bf16.gmra.mxu0 %v622
        %v843 = vpop.f32.mrf.mxu0
        %v844 = vadd.f32 %v831, %v843
        %v845 = vpop.f32.mrf.mxu0
        %846 = vdwg.mxu0
        %847 = vmatpush.bf16.msra.mxu0 %v772
        %848 = vmatpush.bf16.msra.mxu0 %v770
        %849 = vmatpush.bf16.msra.mxu0 %v768
        %850 = vmatpush.bf16.msra.mxu0 %v766
        %851 = vmatpush.bf16.msra.mxu0 %v764
        %852 = vmatpush.bf16.msra.mxu0 %v762
        %853 = vmatpush.bf16.msra.mxu0 %v760
        %854 = vmatpush.bf16.msra.mxu0 %v758
        %855 = vmatmul.bf16.gmra.mxu0 %v621
        %v856 = vpop.f32.mrf.mxu0
        %v857 = vadd.f32 %v658, %v856
        %v858 = vpop.f32.mrf.mxu0
        %859 = vdwg.mxu0
        %860 = vmatpush.bf16.msra.mxu0 %v788
        %861 = vmatpush.bf16.msra.mxu0 %v786
        %862 = vmatpush.bf16.msra.mxu0 %v784
        %863 = vmatpush.bf16.msra.mxu0 %v782
        %864 = vmatpush.bf16.msra.mxu0 %v780
        %865 = vmatpush.bf16.msra.mxu0 %v778
        %866 = vmatpush.bf16.msra.mxu0 %v776
        %867 = vmatpush.bf16.msra.mxu0 %v774
        %868 = vmatmul.bf16.gmra.mxu0 %v622
        %v869 = vpop.f32.mrf.mxu0
        %v870 = vadd.f32 %v857, %v869
        %v871 = vpop.f32.mrf.mxu0
        %872 = vdwg.mxu0
        %v873 = vmax.f32 %v844, 0.0
        %v874 = vmax.f32 %v870, 0.0
        %v875 = vpack.c.bf16 %v873, %v873
        %v876 = vpack.c.bf16 %v874, %v874
        %v877 = vld [vmem:[#allocation10] sm:$0xff]
        %v878 = vld [vmem:[#allocation10 + $0x8] sm:$0xff]
        %v879 = vld [vmem:[#allocation10 + $0x10] sm:$0xff]
        %v880 = vld [vmem:[#allocation10 + $0x18] sm:$0xff]
        %v881 = vld [vmem:[#allocation10 + $0x20] sm:$0xff]
        %v882 = vld [vmem:[#allocation10 + $0x28] sm:$0xff]
        %v883 = vld [vmem:[#allocation10 + $0x30] sm:$0xff]
        %v884 = vld [vmem:[#allocation10 + $0x38] sm:$0xff]
        %v885 = vld [vmem:[#allocation10 + $0x40] sm:$0xff]
        %v886 = vld [vmem:[#allocation10 + $0x48] sm:$0xff]
        %v887 = vld [vmem:[#allocation10 + $0x50] sm:$0xff]
        %v888 = vld [vmem:[#allocation10 + $0x58] sm:$0xff]
        %v889 = vld [vmem:[#allocation10 + $0x60] sm:$0xff]
        %v890 = vld [vmem:[#allocation10 + $0x68] sm:$0xff]
        %v891 = vld [vmem:[#allocation10 + $0x70] sm:$0xff]
        %v892 = vld [vmem:[#allocation10 + $0x78] sm:$0xff]
        %v893 = vld [vmem:[#allocation10 + $0x80] sm:$0xff]
        %v894 = vld [vmem:[#allocation10 + $0x88] sm:$0xff]
        %v895 = vld [vmem:[#allocation10 + $0x90] sm:$0xff]
        %v896 = vld [vmem:[#allocation10 + $0x98] sm:$0xff]
        %v897 = vld [vmem:[#allocation10 + $0xa0] sm:$0xff]
        %v898 = vld [vmem:[#allocation10 + $0xa8] sm:$0xff]
        %v899 = vld [vmem:[#allocation10 + $0xb0] sm:$0xff]
        %v900 = vld [vmem:[#allocation10 + $0xb8] sm:$0xff]
        %v901 = vld [vmem:[#allocation10 + $0xc0] sm:$0xff]
        %v902 = vld [vmem:[#allocation10 + $0xc8] sm:$0xff]
        %v903 = vld [vmem:[#allocation10 + $0xd0] sm:$0xff]
        %v904 = vld [vmem:[#allocation10 + $0xd8] sm:$0xff]
        %v905 = vld [vmem:[#allocation10 + $0xe0] sm:$0xff]
        %v906 = vld [vmem:[#allocation10 + $0xe8] sm:$0xff]
        %v907 = vld [vmem:[#allocation10 + $0xf0] sm:$0xff]
        %v908 = vld [vmem:[#allocation10 + $0xf8] sm:$0xff]
        %v909 = vld [vmem:[%s6] sm:$0x3]
        %v911 = vperm.slane %v909, 0
        %v912 = vperm.slane %v909, 1
        %v947 = vunpack.c.l.b16 %v877
        %v948 = vunpack.c.h.b16 %v877
        %v949 = vunpack.c.l.b16 %v878
        %v950 = vunpack.c.h.b16 %v878
        %v951 = vunpack.c.l.b16 %v879
        %v952 = vunpack.c.h.b16 %v879
        %v953 = vunpack.c.l.b16 %v880
        %v954 = vunpack.c.h.b16 %v880
        %v955 = vunpack.c.l.b16 %v881
        %v956 = vunpack.c.h.b16 %v881
        %v957 = vunpack.c.l.b16 %v882
        %v958 = vunpack.c.h.b16 %v882
        %v959 = vunpack.c.l.b16 %v883
        %v960 = vunpack.c.h.b16 %v883
        %v961 = vunpack.c.l.b16 %v884
        %v962 = vunpack.c.h.b16 %v884
        %v963 = vunpack.c.l.b16 %v885
        %v964 = vunpack.c.h.b16 %v885
        %v965 = vunpack.c.l.b16 %v886
        %v966 = vunpack.c.h.b16 %v886
        %v967 = vunpack.c.l.b16 %v887
        %v968 = vunpack.c.h.b16 %v887
        %v969 = vunpack.c.l.b16 %v888
        %v970 = vunpack.c.h.b16 %v888
        %v971 = vunpack.c.l.b16 %v889
        %v972 = vunpack.c.h.b16 %v889
        %v973 = vunpack.c.l.b16 %v890
        %v974 = vunpack.c.h.b16 %v890
        %v975 = vunpack.c.l.b16 %v891
        %v976 = vunpack.c.h.b16 %v891
        %v977 = vunpack.c.l.b16 %v892
        %v978 = vunpack.c.h.b16 %v892
        %v979 = vunpack.c.l.b16 %v893
        %v980 = vunpack.c.h.b16 %v893
        %v981 = vunpack.c.l.b16 %v894
        %v982 = vunpack.c.h.b16 %v894
        %v983 = vunpack.c.l.b16 %v895
        %v984 = vunpack.c.h.b16 %v895
        %v985 = vunpack.c.l.b16 %v896
        %v986 = vunpack.c.h.b16 %v896
        %v987 = vunpack.c.l.b16 %v897
        %v988 = vunpack.c.h.b16 %v897
        %v989 = vunpack.c.l.b16 %v898
        %v990 = vunpack.c.h.b16 %v898
        %v991 = vunpack.c.l.b16 %v899
        %v992 = vunpack.c.h.b16 %v899
        %v993 = vunpack.c.l.b16 %v900
        %v994 = vunpack.c.h.b16 %v900
        %v995 = vunpack.c.l.b16 %v901
        %v996 = vunpack.c.h.b16 %v901
        %v997 = vunpack.c.l.b16 %v902
        %v998 = vunpack.c.h.b16 %v902
        %v999 = vunpack.c.l.b16 %v903
        %v1000 = vunpack.c.h.b16 %v903
        %v1001 = vunpack.c.l.b16 %v904
        %v1002 = vunpack.c.h.b16 %v904
        %v1003 = vunpack.c.l.b16 %v905
        %v1004 = vunpack.c.h.b16 %v905
        %v1005 = vunpack.c.l.b16 %v906
        %v1006 = vunpack.c.h.b16 %v906
        %v1007 = vunpack.c.l.b16 %v907
        %v1008 = vunpack.c.h.b16 %v907
        %v1009 = vunpack.c.l.b16 %v908
        %v1010 = vunpack.c.h.b16 %v908
        %v1011 = vpack.c.b16 %v949, %v947
        %v1012 = vpack.c.b16 %v950, %v948
        %v1013 = vpack.c.b16 %v953, %v951
        %v1014 = vpack.c.b16 %v954, %v952
        %v1015 = vpack.c.b16 %v957, %v955
        %v1016 = vpack.c.b16 %v958, %v956
        %v1017 = vpack.c.b16 %v961, %v959
        %v1018 = vpack.c.b16 %v962, %v960
        %v1019 = vpack.c.b16 %v965, %v963
        %v1020 = vpack.c.b16 %v966, %v964
        %v1021 = vpack.c.b16 %v969, %v967
        %v1022 = vpack.c.b16 %v970, %v968
        %v1023 = vpack.c.b16 %v973, %v971
        %v1024 = vpack.c.b16 %v974, %v972
        %v1025 = vpack.c.b16 %v977, %v975
        %v1026 = vpack.c.b16 %v978, %v976
        %v1027 = vpack.c.b16 %v981, %v979
        %v1028 = vpack.c.b16 %v982, %v980
        %v1029 = vpack.c.b16 %v985, %v983
        %v1030 = vpack.c.b16 %v986, %v984
        %v1031 = vpack.c.b16 %v989, %v987
        %v1032 = vpack.c.b16 %v990, %v988
        %v1033 = vpack.c.b16 %v993, %v991
        %v1034 = vpack.c.b16 %v994, %v992
        %v1035 = vpack.c.b16 %v997, %v995
        %v1036 = vpack.c.b16 %v998, %v996
        %v1037 = vpack.c.b16 %v1001, %v999
        %v1038 = vpack.c.b16 %v1002, %v1000
        %v1039 = vpack.c.b16 %v1005, %v1003
        %v1040 = vpack.c.b16 %v1006, %v1004
        %v1041 = vpack.c.b16 %v1009, %v1007
        %v1042 = vpack.c.b16 %v1010, %v1008
        %1075 = vmatpush.bf16.msra.mxu0 %v1025
        %1076 = vmatpush.bf16.msra.mxu0 %v1023
        %1077 = vmatpush.bf16.msra.mxu0 %v1021
        %1078 = vmatpush.bf16.msra.mxu0 %v1019
        %1079 = vmatpush.bf16.msra.mxu0 %v1017
        %1080 = vmatpush.bf16.msra.mxu0 %v1015
        %1081 = vmatpush.bf16.msra.mxu0 %v1013
        %1082 = vmatpush.bf16.msra.mxu0 %v1011
        %1083 = vmatmul.bf16.gmra.mxu0 %v875
        %v1084 = vpop.f32.mrf.mxu0
        %v1085 = vadd.f32 %v911, %v1084
        %v1086 = vpop.f32.mrf.mxu0
        %1087 = vdwg.mxu0
        %1088 = vmatpush.bf16.msra.mxu0 %v1041
        %1089 = vmatpush.bf16.msra.mxu0 %v1039
        %1090 = vmatpush.bf16.msra.mxu0 %v1037
        %1091 = vmatpush.bf16.msra.mxu0 %v1035
        %1092 = vmatpush.bf16.msra.mxu0 %v1033
        %1093 = vmatpush.bf16.msra.mxu0 %v1031
        %1094 = vmatpush.bf16.msra.mxu0 %v1029
        %1095 = vmatpush.bf16.msra.mxu0 %v1027
        %1096 = vmatmul.bf16.gmra.mxu0 %v876
        %v1097 = vpop.f32.mrf.mxu0
        %v1098 = vadd.f32 %v1085, %v1097
        %v1099 = vpop.f32.mrf.mxu0
        %1100 = vdwg.mxu0
        %1101 = vmatpush.bf16.msra.mxu0 %v1026
        %1102 = vmatpush.bf16.msra.mxu0 %v1024
        %1103 = vmatpush.bf16.msra.mxu0 %v1022
        %1104 = vmatpush.bf16.msra.mxu0 %v1020
        %1105 = vmatpush.bf16.msra.mxu0 %v1018
        %1106 = vmatpush.bf16.msra.mxu0 %v1016
        %1107 = vmatpush.bf16.msra.mxu0 %v1014
        %1108 = vmatpush.bf16.msra.mxu0 %v1012
        %1109 = vmatmul.bf16.gmra.mxu0 %v875
        %v1110 = vpop.f32.mrf.mxu0
        %v1111 = vadd.f32 %v912, %v1110
        %v1112 = vpop.f32.mrf.mxu0
        %1113 = vdwg.mxu0
        %1114 = vmatpush.bf16.msra.mxu0 %v1042
        %1115 = vmatpush.bf16.msra.mxu0 %v1040
        %1116 = vmatpush.bf16.msra.mxu0 %v1038
        %1117 = vmatpush.bf16.msra.mxu0 %v1036
        %1118 = vmatpush.bf16.msra.mxu0 %v1034
        %1119 = vmatpush.bf16.msra.mxu0 %v1032
        %1120 = vmatpush.bf16.msra.mxu0 %v1030
        %1121 = vmatpush.bf16.msra.mxu0 %v1028
        %1122 = vmatmul.bf16.gmra.mxu0 %v876
        %v1123 = vpop.f32.mrf.mxu0
        %v1124 = vadd.f32 %v1111, %v1123
        %v1125 = vpop.f32.mrf.mxu0
        %1126 = vdwg.mxu0
        %v1127 = vmax.f32 %v1098, 0.0
        %v1128 = vmax.f32 %v1124, 0.0
        %v1129 = vpack.c.bf16 %v1127, %v1127
        %v1130 = vpack.c.bf16 %v1128, %v1128
        %1131 = vmatpush.bf16.msra.mxu0 %v1025
        %1132 = vmatpush.bf16.msra.mxu0 %v1023
        %1133 = vmatpush.bf16.msra.mxu0 %v1021
        %1134 = vmatpush.bf16.msra.mxu0 %v1019
        %1135 = vmatpush.bf16.msra.mxu0 %v1017
        %1136 = vmatpush.bf16.msra.mxu0 %v1015
        %1137 = vmatpush.bf16.msra.mxu0 %v1013
        %1138 = vmatpush.bf16.msra.mxu0 %v1011
        %1139 = vmatmul.bf16.gmra.mxu0 %v1129
        %v1140 = vpop.f32.mrf.mxu0
        %v1141 = vadd.f32 %v911, %v1140
        %v1142 = vpop.f32.mrf.mxu0
        %1143 = vdwg.mxu0
        %1144 = vmatpush.bf16.msra.mxu0 %v1041
        %1145 = vmatpush.bf16.msra.mxu0 %v1039
        %1146 = vmatpush.bf16.msra.mxu0 %v1037
        %1147 = vmatpush.bf16.msra.mxu0 %v1035
        %1148 = vmatpush.bf16.msra.mxu0 %v1033
        %1149 = vmatpush.bf16.msra.mxu0 %v1031
        %1150 = vmatpush.bf16.msra.mxu0 %v1029
        %1151 = vmatpush.bf16.msra.mxu0 %v1027
        %1152 = vmatmul.bf16.gmra.mxu0 %v1130
        %v1153 = vpop.f32.mrf.mxu0
        %v1154 = vadd.f32 %v1141, %v1153
        %v1155 = vpop.f32.mrf.mxu0
        %1156 = vdwg.mxu0
        %1157 = vmatpush.bf16.msra.mxu0 %v1026
        %1158 = vmatpush.bf16.msra.mxu0 %v1024
        %1159 = vmatpush.bf16.msra.mxu0 %v1022
        %1160 = vmatpush.bf16.msra.mxu0 %v1020
        %1161 = vmatpush.bf16.msra.mxu0 %v1018
        %1162 = vmatpush.bf16.msra.mxu0 %v1016
        %1163 = vmatpush.bf16.msra.mxu0 %v1014
        %1164 = vmatpush.bf16.msra.mxu0 %v1012
        %1165 = vmatmul.bf16.gmra.mxu0 %v1129
        %v1166 = vpop.f32.mrf.mxu0
        %v1167 = vadd.f32 %v912, %v1166
        %v1168 = vpop.f32.mrf.mxu0
        %1169 = vdwg.mxu0
        %1170 = vmatpush.bf16.msra.mxu0 %v1042
        %1171 = vmatpush.bf16.msra.mxu0 %v1040
        %1172 = vmatpush.bf16.msra.mxu0 %v1038
        %1173 = vmatpush.bf16.msra.mxu0 %v1036
        %1174 = vmatpush.bf16.msra.mxu0 %v1034
        %1175 = vmatpush.bf16.msra.mxu0 %v1032
        %1176 = vmatpush.bf16.msra.mxu0 %v1030
        %1177 = vmatpush.bf16.msra.mxu0 %v1028
        %1178 = vmatmul.bf16.gmra.mxu0 %v1130
        %v1179 = vpop.f32.mrf.mxu0
        %v1180 = vadd.f32 %v1167, %v1179
        %v1181 = vpop.f32.mrf.mxu0
        %1182 = vdwg.mxu0
        %1183 = vst [vmem:[%s360] sm:$0xff] %v1154
        %1184 = vst [vmem:[%s360 + $0x8] sm:$0xff] %v1180
        %s1185 = sand.u32 %s186, 1
        %s1186 = scalar_lea.sflag [#allocation4], %s1185
        %s1187 = sand.u32 %s186, 1
        %s1188 = smul.addr %s1187, 16
        %s1189 = scalar_lea.vmem [#allocation11], %s1188
        // Predicated region
        $region69: #{tpu_custom_call.1} parent=47 // pred_check
          %p1190 = pneg %p196
        $region70: #{tpu_custom_call.1} parent=47 // pred_check_branch
          %1192 = sbr.rel (%p1190) target = $region72
        $region71: #{tpu_custom_call.1} parent=47 // pred_region
          %1194 = vsyncadd %s1186, 0
          %s1195 = smul.addr %s26, 2
          %s1196 = smul.addr %s1195, 8
          %s1197 = scalar_lea.hbm %s7, %s1196
          %s1199 = sshll.u32 %s1189, 4
          %s1200 = int_to_ptr.vmem [resolvable:$true] %s1199
          %s1201 = sshll.u32 %s1197, 4
          %s1202 = int_to_ptr.hbm [resolvable:$true] %s1201
          %1204 = dma.vmem_to_hbm [thread:$0]  %s1200, 256, %s1202, %s1186
        $region72: #{tpu_custom_call.1} parent=47 // pred_fallthru
          _
      $region48: #{tpu_custom_call.1} parent=5 // pred_fallthru
        _
      %p1205 = scmp.le.s32.totalorder 2, %s21
      // Predicated region
      $region73: #{tpu_custom_call.1} parent=5 // pred_check
        %p1206 = pneg %p1205
      $region74: #{tpu_custom_call.1} parent=5 // pred_check_branch
        %1208 = sbr.rel (%p1206) target = $region76
      $region75: #{tpu_custom_call.1} parent=5 // pred_region
        %s1209 = ssub.s32 %s21, 2
        // Predicated region
        $region77: #{tpu_custom_call.1} parent=75 // pred_check
          %p1210 = pneg %p202
        $region78: #{tpu_custom_call.1} parent=75 // pred_check_branch
          %1212 = sbr.rel (%p1210) target = $region80
        $region79: #{tpu_custom_call.1} parent=75 // pred_region
          %s1213 = sand.u32 %s187, 1
          %s1214 = scalar_lea.sflag [#allocation4], %s1213
          %s1215 = sand.u32 %s187, 1
          %s1216 = smul.addr %s1215, 16
          %s1217 = scalar_lea.vmem [#allocation11], %s1216
          %1219 = dma.done %s1214, 256
        $region80: #{tpu_custom_call.1} parent=75 // pred_fallthru
          _
      $region76: #{tpu_custom_call.1} parent=5 // pred_fallthru
        _
    $region6: #{tpu_custom_call.1} parent=1 // loop_footer
      %s25 = sadd.s32 1, %s21
    $region7: #{tpu_custom_call.1} parent=1 // loop_footer_branch
      %20 = sbr.rel target = $region3
    $region8: #{tpu_custom_call.1} parent=1 // loop_exit
      _
    %1220 = vsyncpa [#allocation3], 1
    %s1221 = scalar_lea.sflag [#allocation3], 1
    %1222 = vsyncpa %s1221, 1
    %1223 = vsyncpa [#allocation6], 1
    %1224 = vsyncpa [#allocation9], 1
    %1225 = vsyncpa [#allocation4], 1
    %s1226 = scalar_lea.sflag [#allocation4], 1
    %1227 = vsyncpa %s1226, 1

</llo_original>
